<compile_context>
chip_gen: v7x
topology: tpu7x:2x2x1
jax: 0.10.0
libtpu: 0.0.40
codegen_flags: <defaults>
</compile_context>

<pallas_src>
import jax
import jax.numpy as jnp
from jax.experimental import pallas as pl
from jax.experimental.pallas import tpu as pltpu


def cnn_kernel(x_ref, w1_ref, b1_ref, w2_ref, b2_ref, wf_ref, bf_ref, o_ref):
    # x_ref: (TB, L, Cin);  w1_ref: (3*Cin, H) cdt;  b1_ref: (1, H) f32
    # w2_ref: (3*H, H) cdt; b2_ref: (1, H) f32
    # wf_ref: (O, H) f32;   bf_ref: (1, O) f32;      o_ref: (TB, O) f32
    TB, L, Cin = x_ref.shape
    H = w1_ref.shape[1]
    cdt = w1_ref.dtype                       # MXU compute dtype (bf16 or f32)

    def im2col_same3(a):
        # a: (TB, L, C) f32 -> (TB*L, 3*C): the three taps of a kernel=3,
        # padding=1 conv packed along the lane (channel) axis so the whole
        # layer is a single matmul with contraction depth 3*C.
        C = a.shape[-1]
        z = jnp.zeros((TB, 1, C), a.dtype)
        ap = jnp.concatenate([z, a, z], axis=1)                       # (TB, L+2, C)
        packed = jnp.concatenate(
            [ap[:, 0:L, :], ap[:, 1:L + 1, :], ap[:, 2:L + 2, :]], axis=2)
        return packed.reshape(TB * L, 3 * C)

    # ---- conv1 (k=3, pad=1): single (TB*L, 3*Cin) x (3*Cin, H) matmul ----
    lhs1 = im2col_same3(x_ref[...].astype(jnp.float32)).astype(cdt)
    y1 = jnp.dot(lhs1, w1_ref[...], preferred_element_type=jnp.float32)
    y1 = jnp.maximum(y1 + b1_ref[...], 0.0)                           # (TB*L, H) f32

    # ---- conv2 (k=3, pad=1): single (TB*L, 3*H) x (3*H, H) matmul ----
    lhs2 = im2col_same3(y1.reshape(TB, L, H)).astype(cdt)
    y2 = jnp.dot(lhs2, w2_ref[...], preferred_element_type=jnp.float32)
    y2 = jnp.maximum(y2 + b2_ref[...], 0.0)                           # (TB*L, H) f32

    # ---- AdaptiveAvgPool1d(1): sum over L fused with 1/L scale ----
    pooled = y2.reshape(TB, L, H).sum(axis=1) * (1.0 / L)             # (TB, H) f32

    # ---- final Linear: H -> O ----
    if wf_ref.shape[0] == 1:
        # O == 1: VPU multiply + lane reduction instead of an N=1 MXU dot.
        out = jnp.sum(pooled * wf_ref[...], axis=-1, keepdims=True) + bf_ref[...]
    else:
        out = jnp.dot(pooled, wf_ref[...].T,
                      preferred_element_type=jnp.float32) + bf_ref[...]
    o_ref[...] = out.astype(o_ref.dtype)


def cnn_forward(x, params, *, tb=8, compute_dtype=jnp.bfloat16,
                vmem_limit_bytes=32 * 1024 * 1024):
    """x: (B, L, input_size) f32. Returns (B, output_size) f32."""
    w1, b1, w2, b2, wf, bf = params
    B, L, Cin = x.shape
    K1, Cin_w, H = w1.shape
    assert K1 == 3 and Cin_w == Cin
    O = wf.shape[1]

    # Host-side packing: fuse the 3 conv taps into one contraction per layer,
    # cast MXU operands to the compute dtype, transpose the final projection.
    w1f = w1.reshape(3 * Cin, H).astype(compute_dtype)
    w2f = w2.reshape(3 * H, H).astype(compute_dtype)
    b1f = b1.astype(jnp.float32)
    b2f = b2.astype(jnp.float32)
    wf_t = wf.T.astype(jnp.float32)          # (O, H)
    bf_f = bf.astype(jnp.float32)            # (1, O)

    # Batch tiling (pad B up to a multiple of the tile; surplus rows sliced off).
    tb = max(1, min(tb, B))
    grid_b = pl.cdiv(B, tb)
    Bp = grid_b * tb
    xp = jnp.pad(x, ((0, Bp - B), (0, 0), (0, 0))) if Bp != B else x

    def full(shape):
        return pl.BlockSpec(shape, lambda b, _n=len(shape): (0,) * _n)

    out = pl.pallas_call(
        cnn_kernel,
        out_shape=jax.ShapeDtypeStruct((Bp, O), jnp.float32),
        grid=(grid_b,),
        in_specs=[
            pl.BlockSpec((tb, L, Cin), lambda b: (b, 0, 0)),
            full(w1f.shape), full(b1f.shape),
            full(w2f.shape), full(b2f.shape),
            full(wf_t.shape), full(bf_f.shape),
        ],
        out_specs=pl.BlockSpec((tb, O), lambda b: (b, 0)),
        compiler_params=pltpu.CompilerParams(
            dimension_semantics=("parallel",),
            vmem_limit_bytes=vmem_limit_bytes,
        ),
    )(xp, w1f, b1f, w2f, b2f, wf_t, bf_f)
    return out[:B]


def cnn_reference(x, params):
    """Pure-JAX f32 reference implementing the same math as the PyTorch module."""
    w1, b1, w2, b2, wf, bf = params
    B, L, Cin = x.shape

    def conv1d_same(inp, w, b):          # inp: (B, L, C), w: (3, C, O), b: (1, O)
        pad = jnp.zeros((B, 1, inp.shape[2]), inp.dtype)
        xp = jnp.concatenate([pad, inp, pad], axis=1)
        out = sum(jnp.einsum('blc,co->blo', xp[:, k:k + L, :], w[k])
                  for k in range(3))
        return out + b[None, :, :]

    y1 = jax.nn.relu(conv1d_same(x, w1, b1))
    y2 = jax.nn.relu(conv1d_same(y1, w2, b2))
    pooled = jnp.mean(y2, axis=1)
    return pooled @ wf + bf


def init_params(key, input_size, hidden_size, output_size=1):
    ks = jax.random.split(key, 6)

    def u(k, shape, fan_in):
        bound = 1.0 / jnp.sqrt(fan_in)
        return jax.random.uniform(k, shape, jnp.float32, -bound, bound)

    w1 = u(ks[0], (3, input_size, hidden_size), 3 * input_size)
    b1 = u(ks[1], (1, hidden_size), 3 * input_size)
    w2 = u(ks[2], (3, hidden_size, hidden_size), 3 * hidden_size)
    b2 = u(ks[3], (1, hidden_size), 3 * hidden_size)
    wf = u(ks[4], (hidden_size, output_size), hidden_size)
    bf = u(ks[5], (1, output_size), hidden_size)
    return (w1, b1, w2, b2, wf, bf)


if __name__ == "__main__":
    B, L, INPUT_SIZE, HIDDEN_SIZE = 2, 8, 4, 32

    key = jax.random.PRNGKey(0)
    k_x, k_p = jax.random.split(key)
    x = jax.random.normal(k_x, (B, L, INPUT_SIZE), jnp.float32)
    params = init_params(k_p, INPUT_SIZE, HIDDEN_SIZE, output_size=1)

    ref = jax.block_until_ready(cnn_reference(x, params))

    # Exact-math check: f32 MXU operands.
    out_f32 = jax.block_until_ready(
        cnn_forward(x, params, compute_dtype=jnp.float32))
    assert out_f32.shape == (B, 1)
    assert jnp.allclose(out_f32, ref, atol=1e-4, rtol=1e-4), (out_f32, ref)

    # Default fast path: bf16 MXU operands, f32 accumulation (v6e/v7x native).
    out_bf16 = jax.block_until_ready(cnn_forward(x, params))
    assert out_bf16.shape == (B, 1)
    assert jnp.allclose(out_bf16, ref, atol=3e-2, rtol=3e-2), (out_bf16, ref)

    print("KERNEL_OK")
</pallas_src>

<mosaic_0001>
module attributes {stable_mosaic.version = 11 : i64} {
  func.func @cnn_kernel(%arg0: i32, %arg1: memref<2x8x4xf32, #tpu.memory_space<vmem>>, %arg2: memref<12x32xf32, #tpu.memory_space<vmem>>, %arg3: memref<1x32xf32, #tpu.memory_space<vmem>>, %arg4: memref<96x32xf32, #tpu.memory_space<vmem>>, %arg5: memref<1x32xf32, #tpu.memory_space<vmem>>, %arg6: memref<1x32xf32, #tpu.memory_space<vmem>>, %arg7: memref<1x1xf32, #tpu.memory_space<vmem>>, %arg8: memref<2x1xf32, #tpu.memory_space<vmem>>) attributes {dimension_semantics = [#tpu.dimension_semantics<parallel>], iteration_bounds = array<i64: 1>, scalar_prefetch = 0 : i64, scratch_operands = 0 : i64, tpu.core_type = #tpu.core_type<tc>, window_params = [{transform_indices = @transform_0, window_bounds = array<i64: 2, 8, 4>}, {pipeline_mode = #tpu.pipeline_mode<synchronous>, transform_indices = @transform_1, window_bounds = array<i64: 12, 32>}, {pipeline_mode = #tpu.pipeline_mode<synchronous>, transform_indices = @transform_2, window_bounds = array<i64: 1, 32>}, {pipeline_mode = #tpu.pipeline_mode<synchronous>, transform_indices = @transform_3, window_bounds = array<i64: 96, 32>}, {pipeline_mode = #tpu.pipeline_mode<synchronous>, transform_indices = @transform_4, window_bounds = array<i64: 1, 32>}, {pipeline_mode = #tpu.pipeline_mode<synchronous>, transform_indices = @transform_5, window_bounds = array<i64: 1, 32>}, {pipeline_mode = #tpu.pipeline_mode<synchronous>, transform_indices = @transform_6, window_bounds = array<i64: 1, 1>}, {transform_indices = @transform_7, window_bounds = array<i64: 2, 1>}]} {
    %c0 = arith.constant 0 : index
    %c0_0 = arith.constant 0 : index
    %c0_1 = arith.constant 0 : index
    %0 = vector.load %arg1[%c0, %c0_0, %c0_1] : memref<2x8x4xf32, #tpu.memory_space<vmem>>, vector<2x8x4xf32>
    %cst = arith.constant 0.000000e+00 : f32
    %1 = vector.broadcast %cst : f32 to vector<2x1x4xf32>
    %2 = tpu.concatenate %1, %0, %1 in 1 : vector<2x1x4xf32>, vector<2x8x4xf32>, vector<2x1x4xf32> -> vector<2x10x4xf32>
    %3 = vector.extract_strided_slice %2 {offsets = [0, 0, 0], sizes = [2, 8, 4], strides = [1, 1, 1]} : vector<2x10x4xf32> to vector<2x8x4xf32>
    %4 = vector.extract_strided_slice %2 {offsets = [0, 1, 0], sizes = [2, 8, 4], strides = [1, 1, 1]} : vector<2x10x4xf32> to vector<2x8x4xf32>
    %5 = vector.extract_strided_slice %2 {offsets = [0, 2, 0], sizes = [2, 8, 4], strides = [1, 1, 1]} : vector<2x10x4xf32> to vector<2x8x4xf32>
    %6 = tpu.concatenate %3, %4, %5 in 2 : vector<2x8x4xf32>, vector<2x8x4xf32>, vector<2x8x4xf32> -> vector<2x8x12xf32>
    %7 = vector.shape_cast %6 : vector<2x8x12xf32> to vector<16x12xf32>
    %c0_2 = arith.constant 0 : index
    %c0_3 = arith.constant 0 : index
    %8 = vector.load %arg2[%c0_2, %c0_3] : memref<12x32xf32, #tpu.memory_space<vmem>>, vector<12x32xf32>
    %cst_4 = arith.constant dense<0.000000e+00> : vector<16x32xf32>
    %9 = tpu.matmul %7, %8, %cst_4 {dimension_numbers = #tpu.dot_dimension_numbers<[1], [0], [0], [1], [0, 0, 1, 1], [], []>} : vector<16x12xf32>, vector<12x32xf32>, vector<16x32xf32> -> vector<16x32xf32>
    %c0_5 = arith.constant 0 : index
    %c0_6 = arith.constant 0 : index
    %10 = vector.load %arg3[%c0_5, %c0_6] : memref<1x32xf32, #tpu.memory_space<vmem>>, vector<1x32xf32>
    %11 = vector.broadcast %10 : vector<1x32xf32> to vector<16x32xf32>
    %12 = arith.addf %9, %11 : vector<16x32xf32>
    %cst_7 = arith.constant 0.000000e+00 : f32
    %13 = vector.broadcast %cst_7 : f32 to vector<16x32xf32>
    %14 = arith.maximumf %12, %13 : vector<16x32xf32>
    %15 = vector.shape_cast %14 : vector<16x32xf32> to vector<2x8x32xf32>
    %cst_8 = arith.constant 0.000000e+00 : f32
    %16 = vector.broadcast %cst_8 : f32 to vector<2x1x32xf32>
    %17 = tpu.concatenate %16, %15, %16 in 1 : vector<2x1x32xf32>, vector<2x8x32xf32>, vector<2x1x32xf32> -> vector<2x10x32xf32>
    %18 = vector.extract_strided_slice %17 {offsets = [0, 0, 0], sizes = [2, 8, 32], strides = [1, 1, 1]} : vector<2x10x32xf32> to vector<2x8x32xf32>
    %19 = vector.extract_strided_slice %17 {offsets = [0, 1, 0], sizes = [2, 8, 32], strides = [1, 1, 1]} : vector<2x10x32xf32> to vector<2x8x32xf32>
    %20 = vector.extract_strided_slice %17 {offsets = [0, 2, 0], sizes = [2, 8, 32], strides = [1, 1, 1]} : vector<2x10x32xf32> to vector<2x8x32xf32>
    %21 = tpu.concatenate %18, %19, %20 in 2 : vector<2x8x32xf32>, vector<2x8x32xf32>, vector<2x8x32xf32> -> vector<2x8x96xf32>
    %22 = vector.shape_cast %21 : vector<2x8x96xf32> to vector<16x96xf32>
    %c0_9 = arith.constant 0 : index
    %c0_10 = arith.constant 0 : index
    %23 = vector.load %arg4[%c0_9, %c0_10] : memref<96x32xf32, #tpu.memory_space<vmem>>, vector<96x32xf32>
    %cst_11 = arith.constant dense<0.000000e+00> : vector<16x32xf32>
    %24 = tpu.matmul %22, %23, %cst_11 {dimension_numbers = #tpu.dot_dimension_numbers<[1], [0], [0], [1], [0, 0, 1, 1], [], []>} : vector<16x96xf32>, vector<96x32xf32>, vector<16x32xf32> -> vector<16x32xf32>
    %c0_12 = arith.constant 0 : index
    %c0_13 = arith.constant 0 : index
    %25 = vector.load %arg5[%c0_12, %c0_13] : memref<1x32xf32, #tpu.memory_space<vmem>>, vector<1x32xf32>
    %26 = vector.broadcast %25 : vector<1x32xf32> to vector<16x32xf32>
    %27 = arith.addf %24, %26 : vector<16x32xf32>
    %cst_14 = arith.constant 0.000000e+00 : f32
    %28 = vector.broadcast %cst_14 : f32 to vector<16x32xf32>
    %29 = arith.maximumf %27, %28 : vector<16x32xf32>
    %30 = vector.shape_cast %29 : vector<16x32xf32> to vector<2x8x32xf32>
    %cst_15 = arith.constant dense<0.000000e+00> : vector<2x32xf32>
    %31 = vector.multi_reduction <add>, %30, %cst_15 [1] : vector<2x8x32xf32> to vector<2x32xf32>
    %cst_16 = arith.constant 1.250000e-01 : f32
    %32 = vector.broadcast %cst_16 : f32 to vector<2x32xf32>
    %33 = arith.mulf %31, %32 : vector<2x32xf32>
    %c0_17 = arith.constant 0 : index
    %c0_18 = arith.constant 0 : index
    %34 = vector.load %arg6[%c0_17, %c0_18] : memref<1x32xf32, #tpu.memory_space<vmem>>, vector<1x32xf32>
    %35 = vector.broadcast %34 : vector<1x32xf32> to vector<2x32xf32>
    %36 = arith.mulf %33, %35 : vector<2x32xf32>
    %cst_19 = arith.constant dense<0.000000e+00> : vector<2xf32>
    %37 = vector.multi_reduction <add>, %36, %cst_19 [1] : vector<2x32xf32> to vector<2xf32>
    %38 = vector.shape_cast %37 : vector<2xf32> to vector<2x1xf32>
    %c0_20 = arith.constant 0 : index
    %c0_21 = arith.constant 0 : index
    %39 = vector.load %arg7[%c0_20, %c0_21] : memref<1x1xf32, #tpu.memory_space<vmem>>, vector<1x1xf32>
    %40 = vector.broadcast %39 : vector<1x1xf32> to vector<2x1xf32>
    %41 = arith.addf %38, %40 : vector<2x1xf32>
    %c0_22 = arith.constant 0 : index
    %c0_23 = arith.constant 0 : index
    %42 = vector.load %arg8[%c0_22, %c0_23] : memref<2x1xf32, #tpu.memory_space<vmem>>, vector<2x1xf32>
    tpu.vector_store %arg8[%c0_22, %c0_23], %41 {strides = array<i32>} : memref<2x1xf32, #tpu.memory_space<vmem>>, vector<2x1xf32>,
    return
  }
  func.func @transform_0(%arg0: i32) -> (i32, i32, i32) {
    %c0_i32 = arith.constant 0 : i32
    %c0_i32_0 = arith.constant 0 : i32
    %c0_i32_1 = arith.constant 0 : i32
    return %arg0, %c0_i32, %c0_i32_0 : i32, i32, i32
  }
  func.func @transform_1(%arg0: i32) -> (i32, i32) {
    %c0_i32 = arith.constant 0 : i32
    %c0_i32_0 = arith.constant 0 : i32
    %c0_i32_1 = arith.constant 0 : i32
    return %c0_i32, %c0_i32_0 : i32, i32
  }
  func.func @transform_2(%arg0: i32) -> (i32, i32) {
    %c0_i32 = arith.constant 0 : i32
    %c0_i32_0 = arith.constant 0 : i32
    %c0_i32_1 = arith.constant 0 : i32
    return %c0_i32, %c0_i32_0 : i32, i32
  }
  func.func @transform_3(%arg0: i32) -> (i32, i32) {
    %c0_i32 = arith.constant 0 : i32
    %c0_i32_0 = arith.constant 0 : i32
    %c0_i32_1 = arith.constant 0 : i32
    return %c0_i32, %c0_i32_0 : i32, i32
  }
  func.func @transform_4(%arg0: i32) -> (i32, i32) {
    %c0_i32 = arith.constant 0 : i32
    %c0_i32_0 = arith.constant 0 : i32
    %c0_i32_1 = arith.constant 0 : i32
    return %c0_i32, %c0_i32_0 : i32, i32
  }
  func.func @transform_5(%arg0: i32) -> (i32, i32) {
    %c0_i32 = arith.constant 0 : i32
    %c0_i32_0 = arith.constant 0 : i32
    %c0_i32_1 = arith.constant 0 : i32
    return %c0_i32, %c0_i32_0 : i32, i32
  }
  func.func @transform_6(%arg0: i32) -> (i32, i32) {
    %c0_i32 = arith.constant 0 : i32
    %c0_i32_0 = arith.constant 0 : i32
    %c0_i32_1 = arith.constant 0 : i32
    return %c0_i32, %c0_i32_0 : i32, i32
  }
  func.func @transform_7(%arg0: i32) -> (i32, i32) {
    %c0_i32 = arith.constant 0 : i32
    %c0_i32_0 = arith.constant 0 : i32
    return %arg0, %c0_i32 : i32, i32
  }
}

</mosaic_0001>

<llo_original>
// kernel: tpu_custom_call.1
$region0: #{tpu_custom_call.1}
  #allocation0 [shape = 'u32[]', space=smem, size = 0x4, offset = 0x4, fixed_abs, tag = 'smem constant byte address 0x4 - core index']
  #allocation1 [shape = 'u32[144,128]{1,0:T(1,128)}', space=vmem, size = 0x12000, scoped, tag = 'internal scratch']
  #allocation2 [shape = 'f32[1,1]{1,0:T(1,128)S(1)}', space=vmem, size = 0x200, scoped, tag = 'scoped memory for tpu_custom_call.1']
  %s0 = inlined_call_operand.vmem [shape: f32[2,8,4], index: 0, kind: input, shape index: {}]
  %s1 = inlined_call_operand.vmem [shape: f32[12,32], index: 1, kind: input, shape index: {}]
  %s2 = inlined_call_operand.vmem [shape: f32[1,32], index: 2, kind: input, shape index: {}]
  %s3 = inlined_call_operand.vmem [shape: f32[96,32], index: 3, kind: input, shape index: {}]
  %s4 = inlined_call_operand.vmem [shape: f32[1,32], index: 4, kind: input, shape index: {}]
  %s5 = inlined_call_operand.vmem [shape: f32[1,32], index: 5, kind: input, shape index: {}]
  %s6 = inlined_call_operand.<no memory space> [shape: f32[1,1], index: 6, kind: input, shape index: {}]
  %s7 = inlined_call_operand.vmem [shape: f32[2,1], index: 7, kind: output, shape index: {}]
  %s8 = sld [smem:[#allocation0]]
  $region38: #{tpu_custom_call.1} parent=0
    _
  %s10 = ssub.s32 1, %s8
  %s11 = scalar_select 0, %s10, %s8
  %v12 = vstv %s6
  %13 = vst [vmem:[#allocation2] sm:$0x1] %v12
  // Predicated region
  $region2: #{tpu_custom_call.1} parent=0 // pred_check
    _
  $region3: #{tpu_custom_call.1} parent=0 // pred_check_branch
    %15 = sbr.rel (0) target = $region5
  $region4: #{tpu_custom_call.1} parent=0 // pred_region
    _
  $region5: #{tpu_custom_call.1} parent=0 // pred_fallthru
    _
  // Predicated region
  $region6: #{tpu_custom_call.1} parent=0 // pred_check
    _
  $region7: #{tpu_custom_call.1} parent=0 // pred_check_branch
    %17 = sbr.rel (0) target = $region9
  $region8: #{tpu_custom_call.1} parent=0 // pred_region
    _
  $region9: #{tpu_custom_call.1} parent=0 // pred_fallthru
    _
  // Predicated region
  $region10: #{tpu_custom_call.1} parent=0 // pred_check
    _
  $region11: #{tpu_custom_call.1} parent=0 // pred_check_branch
    %19 = sbr.rel (0) target = $region13
  $region12: #{tpu_custom_call.1} parent=0 // pred_region
    _
  $region13: #{tpu_custom_call.1} parent=0 // pred_fallthru
    _
  // Predicated region
  $region14: #{tpu_custom_call.1} parent=0 // pred_check
    _
  $region15: #{tpu_custom_call.1} parent=0 // pred_check_branch
    %21 = sbr.rel (0) target = $region17
  $region16: #{tpu_custom_call.1} parent=0 // pred_region
    _
  $region17: #{tpu_custom_call.1} parent=0 // pred_fallthru
    _
  // Predicated region
  $region18: #{tpu_custom_call.1} parent=0 // pred_check
    _
  $region19: #{tpu_custom_call.1} parent=0 // pred_check_branch
    %23 = sbr.rel (0) target = $region21
  $region20: #{tpu_custom_call.1} parent=0 // pred_region
    _
  $region21: #{tpu_custom_call.1} parent=0 // pred_fallthru
    _
  // Predicated region
  $region22: #{tpu_custom_call.1} parent=0 // pred_check
    _
  $region23: #{tpu_custom_call.1} parent=0 // pred_check_branch
    %25 = sbr.rel (0) target = $region25
  $region24: #{tpu_custom_call.1} parent=0 // pred_region
    _
  $region25: #{tpu_custom_call.1} parent=0 // pred_fallthru
    _
  // Predicated region
  $region26: #{tpu_custom_call.1} parent=0 // pred_check
    _
  $region27: #{tpu_custom_call.1} parent=0 // pred_check_branch
    %27 = sbr.rel (0) target = $region29
  $region28: #{tpu_custom_call.1} parent=0 // pred_region
    _
  $region29: #{tpu_custom_call.1} parent=0 // pred_fallthru
    _
  %v28 = vld [vmem:[%s0] sm:$0xff]
  %v29 = vld [vmem:[%s0 + $0x8] sm:$0xff]
  %v32 = vrot.slane %v28, 7
  %v33 = vrot.slane %v29, 7
  %vm36 = vcmask 1040384
  %v37 = vsel %vm36, 0.0, %v32
  %v38 = vsel %vm36, 0.0, %v33
  %v39 = vsel %vm36, %v32, 0.0
  %v40 = vsel %vm36, %v33, 0.0
  %vm45 = vcmask 1046528
  %v46 = vrot.slane %v37, 1
  %v47 = vrot.slane %v39, 1
  %v48 = vsel %vm45, %v46, %v47
  %v49 = vrot.slane %v38, 1
  %v50 = vrot.slane %v40, 1
  %v51 = vsel %vm45, %v49, %v50
  %52 = vrot.lane.b32.xlu0 %v48, 4
  %v53 = vpop.permute.xlu0 %52
  %54 = vrot.lane.b32.xlu0 %v51, 4
  %v55 = vpop.permute.xlu0 %54
  %vm58 = vcmask 1045504
  %v59 = vrot.slane %v37, 2
  %v60 = vrot.slane %v39, 2
  %v61 = vsel %vm58, %v59, %v60
  %v62 = vrot.slane %v38, 2
  %v63 = vrot.slane %v40, 2
  %v64 = vsel %vm58, %v62, %v63
  %65 = vrot.lane.b32.xlu0 %v61, 8
  %v66 = vpop.permute.xlu0 %65
  %67 = vrot.lane.b32.xlu0 %v64, 8
  %v68 = vpop.permute.xlu0 %67
  %vm71 = vcmask 31744
  %v72 = vsel %vm71, %v37, %v53
  %v73 = vsel %vm71, %v38, %v55
  %vm74 = vcmask 64512
  %v75 = vsel %vm74, %v72, %v66
  %v76 = vsel %vm74, %v73, %v68
  %v77 = vld [vmem:[%s1] sm:$0xff]
  %v78 = vld [vmem:[%s1 + $0x8] sm:$0xf]
  %v79 = vld [vmem:[%s2] sm:$0x1]
  %v81 = vlaneseq
  %v82 = vshrl.u32 %v81, 7
  %v83 = vsub.s32 0, %v82
  %v84 = vrot.slane %v79, %v83
  %vm86 = vcmask 97280
  %v88 = vsel %vm86, %v75, 0
  %v91 = vsel %vm86, %v76, 0
  %vm93 = vcmask 1043456
  %v95 = vsel %vm93, %v78, 0
  %97 = vmatprep.subr.mxu0 0.0
  %98 = vmatpush1.msra.mxu0 %v77
  %99 = vmatprep.subr.mxu0 0.0
  %100 = vmatpush1.msra.mxu0 %v95
  %101 = vmatprep.subr.mxu0 0.0
  %102 = vmatpush1.msra.mxu0 0.0
  %103 = vmatprep.subr.mxu0 0.0
  %104 = vmatpush1.msra.mxu0 0.0
  %105 = vmatprep.subr.mxu0 0.0
  %106 = vmatpush1.msra.mxu0 0.0
  %107 = vmatprep.subr.mxu0 0.0
  %108 = vmatpush1.msra.mxu0 0.0
  %109 = vmatprep.subr.mxu0 0.0
  %110 = vmatpush1.msra.mxu0 0.0
  %111 = vmatprep.subr.mxu0 0.0
  %112 = vmatpush1.msra.mxu0 0.0
  %113 = vmatprep.subr.mxu0 0.0
  %114 = vmatpush1.msra.mxu0 0.0
  %115 = vmatprep.subr.mxu0 0.0
  %116 = vmatpush1.msra.mxu0 0.0
  %117 = vmatprep.subr.mxu0 0.0
  %118 = vmatpush1.msra.mxu0 0.0
  %119 = vmatprep.subr.mxu0 0.0
  %120 = vmatpush1.msra.mxu0 0.0
  %121 = vmatprep.subr.mxu0 0.0
  %122 = vmatpush1.msra.mxu0 0.0
  %123 = vmatprep.subr.mxu0 0.0
  %124 = vmatpush1.msra.mxu0 0.0
  %125 = vmatprep.subr.mxu0 0.0
  %126 = vmatpush1.msra.mxu0 0.0
  %127 = vmatprep.subr.mxu0 0.0
  %128 = vmatpush1.msra.mxu0 0.0
  %129 = vmatprep.subr.mxu0 0.0
  %130 = vmatpush1.msra.mxu0 0.0
  %131 = vmatprep.subr.mxu0 0.0
  %132 = vmatpush1.msra.mxu0 0.0
  %133 = vmatprep.subr.mxu0 0.0
  %134 = vmatpush1.msra.mxu0 0.0
  %135 = vmatprep.subr.mxu0 0.0
  %136 = vmatpush1.msra.mxu0 0.0
  %137 = vmatprep.subr.mxu0 0.0
  %138 = vmatpush1.msra.mxu0 0.0
  %139 = vmatprep.subr.mxu0 0.0
  %140 = vmatpush1.msra.mxu0 0.0
  %141 = vmatprep.subr.mxu0 0.0
  %142 = vmatpush1.msra.mxu0 0.0
  %143 = vmatprep.subr.mxu0 0.0
  %144 = vmatpush1.msra.mxu0 0.0
  %145 = vmatprep.subr.mxu0 0.0
  %146 = vmatpush1.msra.mxu0 0.0
  %147 = vmatprep.subr.mxu0 0.0
  %148 = vmatpush1.msra.mxu0 0.0
  %149 = vmatprep.subr.mxu0 0.0
  %150 = vmatpush1.msra.mxu0 0.0
  %151 = vmatprep.subr.mxu0 0.0
  %152 = vmatpush1.msra.mxu0 0.0
  %153 = vmatprep.subr.mxu0 0.0
  %154 = vmatpush1.msra.mxu0 0.0
  %155 = vmatprep.subr.mxu0 0.0
  %156 = vmatpush1.msra.mxu0 0.0
  %157 = vmatprep.subr.mxu0 0.0
  %158 = vmatpush1.msra.mxu0 0.0
  %159 = vmatprep.subr.mxu0 0.0
  %160 = vmatpush1.msra.mxu0 0.0
  %161 = vmatprep.mubr.f32.mxu0 0.0
  %162 = vmatmul.mubr.f32.gmra.mrb[0].mxu0 %v88
  %v163 = vpop.f32.mrb[0].mxu0
  %v164 = vadd.f32 %v84, %v163
  %v165 = vpop.f32.mrb[0].mxu0
  %166 = vmatprep.mubr.f32.mxu0 0.0
  %167 = vmatmul.mubr.f32.gmra.mrb[0].mxu0 %v91
  %v168 = vpop.f32.mrb[0].mxu0
  %v169 = vadd.f32 %v84, %v168
  %v170 = vpop.f32.mrb[0].mxu0
  %171 = vdwg.mxu0
  %v172 = vmax.f32 %v164, 0.0
  %v173 = vmax.f32 %v169, 0.0
  %v176 = vrot.slane %v172, 7
  %v177 = vrot.slane %v173, 7
  %v180 = vsel %vm36, 0.0, %v176
  %v181 = vsel %vm36, 0.0, %v177
  %v182 = vsel %vm36, %v176, 0.0
  %v183 = vsel %vm36, %v177, 0.0
  %v188 = vrot.slane %v180, 1
  %v189 = vrot.slane %v182, 1
  %v190 = vsel %vm45, %v188, %v189
  %v191 = vrot.slane %v181, 1
  %v192 = vrot.slane %v183, 1
  %v193 = vsel %vm45, %v191, %v192
  %194 = vrot.lane.b32.xlu0 %v190, 32
  %v195 = vpop.permute.xlu0 %194
  %196 = vrot.lane.b32.xlu0 %v193, 32
  %v197 = vpop.permute.xlu0 %196
  %v200 = vrot.slane %v180, 2
  %v201 = vrot.slane %v182, 2
  %v202 = vsel %vm58, %v200, %v201
  %v203 = vrot.slane %v181, 2
  %v204 = vrot.slane %v183, 2
  %v205 = vsel %vm58, %v203, %v204
  %206 = vrot.lane.b32.xlu0 %v202, 64
  %v207 = vpop.permute.xlu0 %206
  %208 = vrot.lane.b32.xlu0 %v205, 64
  %v209 = vpop.permute.xlu0 %208
  %vm212 = vcmask 261120
  %v213 = vsel %vm212, %v180, %v195
  %v214 = vsel %vm212, %v181, %v197
  %vm215 = vcmask 523264
  %v216 = vsel %vm215, %v213, %v207
  %v217 = vsel %vm215, %v214, %v209
  %v218 = vld [vmem:[%s3] sm:$0xff]
  %v219 = vld [vmem:[%s3 + $0x8] sm:$0xff]
  %v220 = vld [vmem:[%s3 + $0x10] sm:$0xff]
  %v221 = vld [vmem:[%s3 + $0x18] sm:$0xff]
  %v222 = vld [vmem:[%s3 + $0x20] sm:$0xff]
  %v223 = vld [vmem:[%s3 + $0x28] sm:$0xff]
  %v224 = vld [vmem:[%s3 + $0x30] sm:$0xff]
  %v225 = vld [vmem:[%s3 + $0x38] sm:$0xff]
  %v226 = vld [vmem:[%s3 + $0x40] sm:$0xff]
  %v227 = vld [vmem:[%s3 + $0x48] sm:$0xff]
  %v228 = vld [vmem:[%s3 + $0x50] sm:$0xff]
  %v229 = vld [vmem:[%s3 + $0x58] sm:$0xff]
  %v230 = vld [vmem:[%s4] sm:$0x1]
  %v232 = vlaneseq
  %v233 = vshrl.u32 %v232, 7
  %v234 = vsub.s32 0, %v233
  %v235 = vrot.slane %v230, %v234
  %vm237 = vcmask 785408
  %v239 = vsel %vm237, %v216, 0
  %v242 = vsel %vm237, %v217, 0
  %244 = vmatprep.subr.mxu0 0.0
  %245 = vmatpush1.msra.mxu0 %v218
  %246 = vmatprep.subr.mxu0 0.0
  %247 = vmatpush1.msra.mxu0 %v219
  %248 = vmatprep.subr.mxu0 0.0
  %249 = vmatpush1.msra.mxu0 %v220
  %250 = vmatprep.subr.mxu0 0.0
  %251 = vmatpush1.msra.mxu0 %v221
  %252 = vmatprep.subr.mxu0 0.0
  %253 = vmatpush1.msra.mxu0 %v222
  %254 = vmatprep.subr.mxu0 0.0
  %255 = vmatpush1.msra.mxu0 %v223
  %256 = vmatprep.subr.mxu0 0.0
  %257 = vmatpush1.msra.mxu0 %v224
  %258 = vmatprep.subr.mxu0 0.0
  %259 = vmatpush1.msra.mxu0 %v225
  %260 = vmatprep.subr.mxu0 0.0
  %261 = vmatpush1.msra.mxu0 %v226
  %262 = vmatprep.subr.mxu0 0.0
  %263 = vmatpush1.msra.mxu0 %v227
  %264 = vmatprep.subr.mxu0 0.0
  %265 = vmatpush1.msra.mxu0 %v228
  %266 = vmatprep.subr.mxu0 0.0
  %267 = vmatpush1.msra.mxu0 %v229
  %268 = vmatprep.subr.mxu0 0.0
  %269 = vmatpush1.msra.mxu0 0.0
  %270 = vmatprep.subr.mxu0 0.0
  %271 = vmatpush1.msra.mxu0 0.0
  %272 = vmatprep.subr.mxu0 0.0
  %273 = vmatpush1.msra.mxu0 0.0
  %274 = vmatprep.subr.mxu0 0.0
  %275 = vmatpush1.msra.mxu0 0.0
  %276 = vmatprep.subr.mxu0 0.0
  %277 = vmatpush1.msra.mxu0 0.0
  %278 = vmatprep.subr.mxu0 0.0
  %279 = vmatpush1.msra.mxu0 0.0
  %280 = vmatprep.subr.mxu0 0.0
  %281 = vmatpush1.msra.mxu0 0.0
  %282 = vmatprep.subr.mxu0 0.0
  %283 = vmatpush1.msra.mxu0 0.0
  %284 = vmatprep.subr.mxu0 0.0
  %285 = vmatpush1.msra.mxu0 0.0
  %286 = vmatprep.subr.mxu0 0.0
  %287 = vmatpush1.msra.mxu0 0.0
  %288 = vmatprep.subr.mxu0 0.0
  %289 = vmatpush1.msra.mxu0 0.0
  %290 = vmatprep.subr.mxu0 0.0
  %291 = vmatpush1.msra.mxu0 0.0
  %292 = vmatprep.subr.mxu0 0.0
  %293 = vmatpush1.msra.mxu0 0.0
  %294 = vmatprep.subr.mxu0 0.0
  %295 = vmatpush1.msra.mxu0 0.0
  %296 = vmatprep.subr.mxu0 0.0
  %297 = vmatpush1.msra.mxu0 0.0
  %298 = vmatprep.subr.mxu0 0.0
  %299 = vmatpush1.msra.mxu0 0.0
  %300 = vmatprep.subr.mxu0 0.0
  %301 = vmatpush1.msra.mxu0 0.0
  %302 = vmatprep.subr.mxu0 0.0
  %303 = vmatpush1.msra.mxu0 0.0
  %304 = vmatprep.subr.mxu0 0.0
  %305 = vmatpush1.msra.mxu0 0.0
  %306 = vmatprep.subr.mxu0 0.0
  %307 = vmatpush1.msra.mxu0 0.0
  %308 = vmatprep.mubr.f32.mxu0 0.0
  %309 = vmatmul.mubr.f32.gmra.mrb[0].mxu0 %v239
  %v310 = vpop.f32.mrb[0].mxu0
  %v311 = vadd.f32 %v235, %v310
  %v312 = vpop.f32.mrb[0].mxu0
  %313 = vmatprep.mubr.f32.mxu0 0.0
  %314 = vmatmul.mubr.f32.gmra.mrb[0].mxu0 %v242
  %v315 = vpop.f32.mrb[0].mxu0
  %v316 = vadd.f32 %v235, %v315
  %v317 = vpop.f32.mrb[0].mxu0
  %318 = vdwg.mxu0
  %v319 = vmax.f32 %v311, 0.0
  %v320 = vmax.f32 %v316, 0.0
  %v321 = vsel %vm212, %v319, 0.0
  %v322 = vrot.slane %v321, 4
  %v323 = vadd.f32 %v321, %v322
  %v324 = vrot.slane %v323, 2
  %v325 = vadd.f32 %v323, %v324
  %v326 = vrot.slane %v325, 1
  %v327 = vadd.f32 %v325, %v326
  %v328 = vsel %vm212, %v320, 0.0
  %v329 = vrot.slane %v328, 4
  %v330 = vadd.f32 %v328, %v329
  %v331 = vrot.slane %v330, 2
  %v332 = vadd.f32 %v330, %v331
  %v333 = vrot.slane %v332, 1
  %v334 = vadd.f32 %v332, %v333
  %v335 = vmul.f32 %v327, 0.125
  %v336 = vmul.f32 %v334, 0.125
  %v337 = vld [vmem:[%s5] sm:$0x1]
  %v339 = vlaneseq
  %v340 = vshrl.u32 %v339, 7
  %v341 = vsub.s32 0, %v340
  %v342 = vrot.slane %v337, %v341
  %v344 = vmul.f32 %v335, %v342
  %v345 = vmul.f32 %v336, %v342
  %v348 = vrot.slane %v345, 7
  %vm349 = vcmask 1041409
  %v350 = vsel %vm349, %v348, %v344
  %vm352 = vcmask 254976
  %v353 = vsel %vm352, %v350, 0.0
  %354 = vadd.xlane.f32.xlu0 %v353
  %v355 = vpop.xlane.xlu0 %354
  %v356 = vld [vmem:[#allocation2] sm:$0x1]
  %v358 = vlaneseq
  %v359 = vshrl.u32 %v358, 7
  %v360 = vsub.s32 0, %v359
  %v361 = vrot.slane %v356, %v360
  %v363 = vadd.f32 %v355, %v361
  %vm364 = vcmask 1024
  %365 = vst.msk [vmem:[%s7] sm:$0x3] %vm364, %v363
  // Predicated region
  $region30: #{tpu_custom_call.1} parent=0 // pred_check
    _
  $region31: #{tpu_custom_call.1} parent=0 // pred_check_branch
    %367 = sbr.rel (0) target = $region33
  $region32: #{tpu_custom_call.1} parent=0 // pred_region
    _
  $region33: #{tpu_custom_call.1} parent=0 // pred_fallthru
    _
  // Predicated region
  $region34: #{tpu_custom_call.1} parent=0 // pred_check
    _
  $region35: #{tpu_custom_call.1} parent=0 // pred_check_branch
    %369 = sbr.rel (0) target = $region37
  $region36: #{tpu_custom_call.1} parent=0 // pred_region
    _
  $region37: #{tpu_custom_call.1} parent=0 // pred_fallthru
    _

</llo_original>
